<compile_context>
chip_gen: v7x
topology: tpu7x:2x2x1
jax: 0.10.0
libtpu: 0.0.40
codegen_flags: <defaults>
</compile_context>

<pallas_src>
import numpy as np
import jax
import jax.numpy as jnp
from jax.experimental import pallas as pl
from jax.experimental.pallas import tpu as pltpu

# ---- deterministic "parameters" (from the module __init__) -----------------
_GK = np.array([0.05, 0.25, 0.4, 0.25, 0.05], dtype=np.float64)  # 1-D Gaussian

_R_TARGET = 512   # target sublane extent of a super-tile
_L_TARGET = 512   # target lane extent of a super-tile


def _cdiv(a, b):
    return -(-a // b)


def _band_matrix(n):
    """1-D 5-tap replicate-pad Gaussian as an (n, n) banded matrix."""
    a = np.zeros((n, n), np.float64)
    for i in range(n):
        for t in range(-2, 3):
            j = min(max(i + t, 0), n - 1)
            a[i, j] += _GK[t + 2]
    return a


def _edge_operators(H, W, ky, kx, r_pad, l_pad):
    """Fold gauss -> even {4,0} mask -> gauss into left/right matrices.

    Per plane:  gauss(M * gauss(d)) = Bv @ d @ Bw   with
      Bv = A_H @ diag(m_rows) @ A_H,   Bw = A_W^T @ diag(m_cols) @ A_W^T,
    extended block-diagonally over the packed planes and zero-embedded into the
    (8,128)-aligned padded tile.
    """
    a_h = _band_matrix(H)
    a_w = _band_matrix(W)
    m_r = np.where(np.arange(H) % 2 == 0, 2.0, 0.0)
    m_c = np.where(np.arange(W) % 2 == 0, 2.0, 0.0)
    bv = a_h @ np.diag(m_r) @ a_h              # (H, H)  left operator
    bw = a_w.T @ np.diag(m_c) @ a_w.T          # (W, W)  right operator
    bv_big = np.kron(np.eye(ky), bv)           # block-diag over sublane groups
    bw_big = np.kron(np.eye(kx), bw)           # block-diag over lane-packed planes
    bvp = np.zeros((r_pad, r_pad), np.float32)
    bwp = np.zeros((l_pad, l_pad), np.float32)
    bvp[: ky * H, : ky * H] = bv_big
    bwp[: kx * W, : kx * W] = bw_big
    return jnp.asarray(bvp), jnp.asarray(bwp)


def _num_tensorcores():
    """2 TensorCores per device on v4/v5p/v7x; 1 on v5e/v6e (and fallback)."""
    try:
        kind = jax.devices()[0].device_kind.lower()
    except Exception:
        return 1
    if ("v4" in kind) or ("v5p" in kind) or ("v7" in kind):
        return 2
    return 1


def _edge_loss_kernel(bv_ref, bw_ref, x_ref, y_ref, o_ref, acc_ref):
    j = pl.program_id(1)

    @pl.when(j == 0)
    def _():
        acc_ref[...] = jnp.zeros_like(acc_ref)

    # Linearity: lap(x) - lap(y) == lap(x - y).  Cast to f32 on load so the
    # HBM traffic stays in the native input dtype.
    d = x_ref[0].astype(jnp.float32) - y_ref[0].astype(jnp.float32)    # (R, L)

    # lap(d) = d - Bv @ d @ Bw : two MXU matmuls, no pad-concats / tap shifts.
    t = jnp.dot(d, bw_ref[...], preferred_element_type=jnp.float32)    # (R, L)
    r = jnp.dot(bv_ref[...], t, preferred_element_type=jnp.float32)    # (R, L)
    acc_ref[...] += jnp.abs(d - r)                                     # VPU only

    @pl.when(j == pl.num_programs(1) - 1)
    def _():
        # Single cross-lane reduction + tiny store, once per core slice.
        o_ref[...] = jnp.zeros((1, 1, 1), jnp.float32) + jnp.sum(acc_ref[...])


def edge_loss(x, y, loss_weight=1.0):
    """x, y: (N, C, H, W). Returns scalar f32 loss."""
    N, C, H, W = x.shape
    P = N * C
    xp = x.reshape(P, H, W)
    yp = y.reshape(P, H, W)

    # ---- lane/sublane-dense super-tile packing ------------------------------
    kx = max(1, min(_L_TARGET // W, P))                 # planes along lanes
    ky = max(1, min(_R_TARGET // H, _cdiv(P, kx)))      # groups along sublanes
    planes_per_tile = kx * ky
    L, R = kx * W, ky * H
    l_pad = _cdiv(L, 128) * 128                         # lane-dense, aligned
    r_pad = _cdiv(R, 8) * 8

    ncores = _num_tensorcores()
    n_tiles = _cdiv(P, planes_per_tile)
    tiles_per_core = _cdiv(n_tiles, ncores)
    n_tiles_pad = ncores * tiles_per_core
    p_pad = n_tiles_pad * planes_per_tile

    def pack(a):
        if p_pad != P:
            a = jnp.pad(a, ((0, p_pad - P), (0, 0), (0, 0)))  # zero planes: lap==0
        a = a.reshape(n_tiles_pad, ky, kx, H, W)
        a = a.transpose(0, 1, 3, 2, 4).reshape(n_tiles_pad, R, L)
        if (r_pad, l_pad) != (R, L):
            a = jnp.pad(a, ((0, 0), (0, r_pad - R), (0, l_pad - L)))
        return a

    xp = pack(xp)
    yp = pack(yp)
    bv, bw = _edge_operators(H, W, ky, kx, r_pad, l_pad)

    # VMEM budget: 2 inputs x 2 buffers x tile + 2 resident operators + acc.
    tile_bytes = r_pad * l_pad * 4
    vmem_need = (4 * tile_bytes + 2 * r_pad * r_pad * 4 + 2 * l_pad * l_pad * 4
                 + tile_bytes + 4096)
    vmem_limit = int(min(max(2 * vmem_need, 16 * 1024 * 1024), 48 * 1024 * 1024))

    partials = pl.pallas_call(
        _edge_loss_kernel,
        out_shape=jax.ShapeDtypeStruct((ncores, 1, 1), jnp.float32),
        grid_spec=pltpu.PrefetchScalarGridSpec(
            num_scalar_prefetch=0,
            grid=(ncores, tiles_per_core),
            in_specs=[
                pl.BlockSpec((r_pad, r_pad), lambda c, j: (0, 0)),      # Bv (resident)
                pl.BlockSpec((l_pad, l_pad), lambda c, j: (0, 0)),      # Bw (resident)
                pl.BlockSpec((1, r_pad, l_pad),
                             lambda c, j: (c * tiles_per_core + j, 0, 0)),  # x
                pl.BlockSpec((1, r_pad, l_pad),
                             lambda c, j: (c * tiles_per_core + j, 0, 0)),  # y
            ],
            out_specs=pl.BlockSpec((1, 1, 1), lambda c, j: (c, 0, 0)),
            scratch_shapes=[pltpu.VMEM((r_pad, l_pad), jnp.float32)],
        ),
        compiler_params=pltpu.CompilerParams(
            dimension_semantics=("parallel", "arbitrary"),
            vmem_limit_bytes=vmem_limit),
    )(bv, bw, xp, yp)

    scale = float(loss_weight) / float(N * C * H * W)
    return jnp.sum(partials) * scale


# ---- pure-JAX reference (for verification only) -----------------------------
def ref_edge_loss(x, y, loss_weight=1.0):
    C = x.shape[1]
    k2 = np.outer(_GK, _GK)
    kern = jnp.broadcast_to(jnp.asarray(k2, jnp.float32), (C, 1, 5, 5))

    def conv_gauss(img):
        p = jnp.pad(img, ((0, 0), (0, 0), (2, 2), (2, 2)), mode='edge')
        return jax.lax.conv_general_dilated(
            p, kern, (1, 1), 'VALID',
            dimension_numbers=('NCHW', 'OIHW', 'NCHW'),
            feature_group_count=C,
            precision=jax.lax.Precision.HIGHEST)

    def lap(img):
        f = conv_gauss(img)
        nf = jnp.zeros_like(f).at[:, :, ::2, ::2].set(f[:, :, ::2, ::2] * 4.0)
        return img - conv_gauss(nf)

    return jnp.mean(jnp.abs(lap(x) - lap(y))) * loss_weight


if __name__ == "__main__":
    key = jax.random.PRNGKey(0)
    k1, k2 = jax.random.split(key)
    # the module's depthwise Gaussian is built for 3 channels (groups=3)
    N, C, H, W = 2, 3, 16, 16
    x = jax.random.normal(k1, (N, C, H, W), dtype=jnp.float32)
    y = jax.random.normal(k2, (N, C, H, W), dtype=jnp.float32)

    loss = jax.block_until_ready(edge_loss(x, y, loss_weight=1.0))
    ref = jax.block_until_ready(ref_edge_loss(x, y, loss_weight=1.0))

    # MXU accumulation order differs from the lax.conv reference; allow a
    # modest tolerance.
    assert np.allclose(np.asarray(loss), np.asarray(ref), rtol=2e-3, atol=1e-5), (
        float(loss), float(ref))
    print("KERNEL_OK")
</pallas_src>

<mosaic_0001>
module attributes {stable_mosaic.version = 11 : i64} {
  func.func @_edge_loss_kernel(%arg0: i32, %arg1: i32, %arg2: memref<16x16xf32, #tpu.memory_space<vmem>>, %arg3: memref<128x128xf32, #tpu.memory_space<vmem>>, %arg4: memref<1x16x128xf32, #tpu.memory_space<vmem>>, %arg5: memref<1x16x128xf32, #tpu.memory_space<vmem>>, %arg6: memref<1x1x1xf32, #tpu.memory_space<vmem>>, %arg7: memref<16x128xf32, #tpu.memory_space<vmem>>) attributes {dimension_semantics = [#tpu.dimension_semantics<parallel>, #tpu.dimension_semantics<arbitrary>], iteration_bounds = array<i64: 1, 1>, scalar_prefetch = 0 : i64, scratch_operands = 1 : i64, tpu.core_type = #tpu.core_type<tc>, window_params = [{pipeline_mode = #tpu.pipeline_mode<synchronous>, transform_indices = @transform_0, window_bounds = array<i64: 16, 16>}, {pipeline_mode = #tpu.pipeline_mode<synchronous>, transform_indices = @transform_1, window_bounds = array<i64: 128, 128>}, {transform_indices = @transform_2, window_bounds = array<i64: 1, 16, 128>}, {transform_indices = @transform_3, window_bounds = array<i64: 1, 16, 128>}, {transform_indices = @transform_4, window_bounds = array<i64: 1, 1, 1>}]} {
    %c0_i32 = arith.constant 0 : i32
    %0 = arith.cmpi eq, %arg1, %c0_i32 : i32
    %1 = arith.extui %0 : i1 to i32
    %c0_i32_0 = arith.constant 0 : i32
    %2 = arith.cmpi ne, %1, %c0_i32_0 : i32
    scf.if %2 {
      %cst_17 = arith.constant 0.000000e+00 : f32
      %20 = vector.broadcast %cst_17 : f32 to vector<16x128xf32>
      %c0_18 = arith.constant 0 : index
      %c0_19 = arith.constant 0 : index
      %21 = vector.load %arg7[%c0_18, %c0_19] : memref<16x128xf32, #tpu.memory_space<vmem>>, vector<16x128xf32>
      tpu.vector_store %arg7[%c0_18, %c0_19], %20 {strides = array<i32>} : memref<16x128xf32, #tpu.memory_space<vmem>>, vector<16x128xf32>,
    } else {
    }
    %c0 = arith.constant 0 : index
    %c0_1 = arith.constant 0 : index
    %c0_2 = arith.constant 0 : index
    %3 = vector.load %arg4[%c0, %c0_1, %c0_2] : memref<1x16x128xf32, #tpu.memory_space<vmem>>, vector<1x16x128xf32>
    %4 = vector.shape_cast %3 : vector<1x16x128xf32> to vector<16x128xf32>
    %c0_3 = arith.constant 0 : index
    %c0_4 = arith.constant 0 : index
    %c0_5 = arith.constant 0 : index
    %5 = vector.load %arg5[%c0_3, %c0_4, %c0_5] : memref<1x16x128xf32, #tpu.memory_space<vmem>>, vector<1x16x128xf32>
    %6 = vector.shape_cast %5 : vector<1x16x128xf32> to vector<16x128xf32>
    %7 = arith.subf %4, %6 : vector<16x128xf32>
    %c0_6 = arith.constant 0 : index
    %c0_7 = arith.constant 0 : index
    %8 = vector.load %arg3[%c0_6, %c0_7] : memref<128x128xf32, #tpu.memory_space<vmem>>, vector<128x128xf32>
    %cst = arith.constant dense<0.000000e+00> : vector<16x128xf32>
    %9 = tpu.matmul %7, %8, %cst {dimension_numbers = #tpu.dot_dimension_numbers<[1], [0], [0], [1], [0, 0, 1, 1], [], []>} : vector<16x128xf32>, vector<128x128xf32>, vector<16x128xf32> -> vector<16x128xf32>
    %c0_8 = arith.constant 0 : index
    %c0_9 = arith.constant 0 : index
    %10 = vector.load %arg2[%c0_8, %c0_9] : memref<16x16xf32, #tpu.memory_space<vmem>>, vector<16x16xf32>
    %cst_10 = arith.constant dense<0.000000e+00> : vector<16x128xf32>
    %11 = tpu.matmul %10, %9, %cst_10 {dimension_numbers = #tpu.dot_dimension_numbers<[1], [0], [0], [1], [0, 0, 1, 1], [], []>} : vector<16x16xf32>, vector<16x128xf32>, vector<16x128xf32> -> vector<16x128xf32>
    %c0_11 = arith.constant 0 : index
    %c0_12 = arith.constant 0 : index
    %12 = vector.load %arg7[%c0_11, %c0_12] : memref<16x128xf32, #tpu.memory_space<vmem>>, vector<16x128xf32>
    %13 = arith.subf %7, %11 : vector<16x128xf32>
    %14 = math.absf %13 : vector<16x128xf32>
    %15 = arith.addf %12, %14 : vector<16x128xf32>
    %c0_13 = arith.constant 0 : index
    %c0_14 = arith.constant 0 : index
    %16 = vector.load %arg7[%c0_13, %c0_14] : memref<16x128xf32, #tpu.memory_space<vmem>>, vector<16x128xf32>
    tpu.vector_store %arg7[%c0_13, %c0_14], %15 {strides = array<i32>} : memref<16x128xf32, #tpu.memory_space<vmem>>, vector<16x128xf32>,
    %c0_i32_15 = arith.constant 0 : i32
    %17 = arith.cmpi eq, %arg1, %c0_i32_15 : i32
    %18 = arith.extui %17 : i1 to i32
    %c0_i32_16 = arith.constant 0 : i32
    %19 = arith.cmpi ne, %18, %c0_i32_16 : i32
    scf.if %19 {
      %cst_17 = arith.constant 0.000000e+00 : f32
      %20 = vector.broadcast %cst_17 : f32 to vector<1x1x1xf32>
      %c0_18 = arith.constant 0 : index
      %c0_19 = arith.constant 0 : index
      %21 = vector.load %arg7[%c0_18, %c0_19] : memref<16x128xf32, #tpu.memory_space<vmem>>, vector<16x128xf32>
      %22 = vector.shape_cast %21 : vector<16x128xf32> to vector<1x16x128xf32>
      %cst_20 = arith.constant dense<0.000000e+00> : vector<1xf32>
      %23 = vector.multi_reduction <add>, %22, %cst_20 [1, 2] : vector<1x16x128xf32> to vector<1xf32>
      %24 = vector.shape_cast %23 : vector<1xf32> to vector<1x1x1xf32>
      %25 = vector.extract %24[0, 0, 0] : f32 from vector<1x1x1xf32>
      %26 = vector.broadcast %25 : f32 to vector<1x1x1xf32>
      %27 = arith.addf %20, %26 : vector<1x1x1xf32>
      %c0_21 = arith.constant 0 : index
      %c0_22 = arith.constant 0 : index
      %c0_23 = arith.constant 0 : index
      %28 = vector.load %arg6[%c0_21, %c0_22, %c0_23] : memref<1x1x1xf32, #tpu.memory_space<vmem>>, vector<1x1x1xf32>
      tpu.vector_store %arg6[%c0_21, %c0_22, %c0_23], %27 {strides = array<i32>} : memref<1x1x1xf32, #tpu.memory_space<vmem>>, vector<1x1x1xf32>,
    } else {
    }
    return
  }
  func.func @transform_0(%arg0: i32, %arg1: i32) -> (i32, i32) {
    %c0_i32 = arith.constant 0 : i32
    %c0_i32_0 = arith.constant 0 : i32
    %c0_i32_1 = arith.constant 0 : i32
    return %c0_i32, %c0_i32_0 : i32, i32
  }
  func.func @transform_1(%arg0: i32, %arg1: i32) -> (i32, i32) {
    %c0_i32 = arith.constant 0 : i32
    %c0_i32_0 = arith.constant 0 : i32
    %c0_i32_1 = arith.constant 0 : i32
    return %c0_i32, %c0_i32_0 : i32, i32
  }
  func.func @transform_2(%arg0: i32, %arg1: i32) -> (i32, i32, i32) {
    %c1_i32 = arith.constant 1 : i32
    %0 = arith.muli %arg0, %c1_i32 : i32
    %1 = arith.addi %0, %arg1 : i32
    %c0_i32 = arith.constant 0 : i32
    %c0_i32_0 = arith.constant 0 : i32
    %c0_i32_1 = arith.constant 0 : i32
    return %1, %c0_i32, %c0_i32_0 : i32, i32, i32
  }
  func.func @transform_3(%arg0: i32, %arg1: i32) -> (i32, i32, i32) {
    %c1_i32 = arith.constant 1 : i32
    %0 = arith.muli %arg0, %c1_i32 : i32
    %1 = arith.addi %0, %arg1 : i32
    %c0_i32 = arith.constant 0 : i32
    %c0_i32_0 = arith.constant 0 : i32
    %c0_i32_1 = arith.constant 0 : i32
    return %1, %c0_i32, %c0_i32_0 : i32, i32, i32
  }
  func.func @transform_4(%arg0: i32, %arg1: i32) -> (i32, i32, i32) {
    %c0_i32 = arith.constant 0 : i32
    %c0_i32_0 = arith.constant 0 : i32
    %c0_i32_1 = arith.constant 0 : i32
    return %arg0, %c0_i32, %c0_i32_0 : i32, i32, i32
  }
}

</mosaic_0001>

<llo_original>
// kernel: tpu_custom_call.1
$region0: #{tpu_custom_call.1}
  #allocation0 [shape = 'u32[]', space=smem, size = 0x4, offset = 0x4, fixed_abs, tag = 'smem constant byte address 0x4 - core index']
  #allocation1 [shape = 'u32[144,128]{1,0:T(1,128)}', space=vmem, size = 0x12000, scoped, tag = 'internal scratch']
  #allocation2 [shape = 'f32[16,128]{1,0:T(8,128)}', space=vmem, size = 0x2000, scoped, tag = 'scratch operand']
  %s0 = inlined_call_operand.hbm [shape: f32[16,16], index: 0, kind: input, shape index: {}]
  %s1 = inlined_call_operand.hbm [shape: f32[128,128], index: 1, kind: input, shape index: {}]
  %s2 = inlined_call_operand.hbm [shape: f32[1,16,128], index: 2, kind: input, shape index: {}]
  %s3 = inlined_call_operand.hbm [shape: f32[1,16,128], index: 3, kind: input, shape index: {}]
  %s4 = inlined_call_operand.hbm [shape: f32[1,1,1], index: 4, kind: output, shape index: {}]
  %s5 = sld [smem:[#allocation0]]
  $region50: #{tpu_custom_call.1} parent=0
    _
  %s7 = ssub.s32 1, %s5
  %s8 = scalar_select 0, %s7, %s5
  $region1: #{tpu_custom_call.1} parent=0
    #allocation3 [shape = 'u8[8192]{0}', space=vmem, size = 0x2000, scoped, tag = 'input window, operand 0, single buffered']
    #allocation4 [shape = 's32[1]{0}', space=sflag, size = 0x4, scoped, tag = 'scoped memory for tpu_custom_call.1']
    #allocation5 [shape = 's32[1]{0}', space=sflag, size = 0x4, scoped, tag = 'scoped memory for tpu_custom_call.1']
    #allocation6 [shape = 'u8[65536]{0}', space=vmem, size = 0x10000, scoped, tag = 'input window, operand 1, single buffered']
    #allocation7 [shape = 's32[1]{0}', space=sflag, size = 0x4, scoped, tag = 'scoped memory for tpu_custom_call.1']
    #allocation8 [shape = 'u8[8192]{0}', space=vmem, size = 0x2000, scoped, tag = 'input window, operand 2, single buffered']
    #allocation9 [shape = 'u8[8192]{0}', space=vmem, size = 0x2000, scoped, tag = 'input window, operand 3, single buffered']
    #allocation10 [shape = 's32[1]{0}', space=sflag, size = 0x4, scoped, tag = 'scoped memory for tpu_custom_call.1']
    #allocation11 [shape = 'u8[512]{0}', space=vmem, size = 0x400, scoped, tag = 'output window, operand 0, single buffered']
    %9 = vsyncpa [#allocation4], 0
    %10 = vsyncpa [#allocation7], 0
    %11 = vsyncpa [#allocation10], 0
    %12 = vsyncpa [#allocation5], 0
    // Predicated region
    $region2: #{tpu_custom_call.1} parent=1 // pred_check
      _
    $region3: #{tpu_custom_call.1} parent=1 // pred_check_branch
      %14 = sbr.rel (0) target = $region5
    $region4: #{tpu_custom_call.1} parent=1 // pred_region
      %s16 = ssub.s32 256, 256
      %17 = vsyncadd [#allocation4], %s16
      %s18 = sshll.u32 [#allocation3], 4
      %s19 = int_to_ptr.vmem [resolvable:$true] %s18
      %24 = dma.hbm_to_vmem [thread:$0]  %s0, 256, %s19, [#allocation4], 128, 128, 8
    $region5: #{tpu_custom_call.1} parent=1 // pred_fallthru
      _
    // Predicated region
    $region6: #{tpu_custom_call.1} parent=1 // pred_check
      _
    $region7: #{tpu_custom_call.1} parent=1 // pred_check_branch
      %26 = sbr.rel (0) target = $region9
    $region8: #{tpu_custom_call.1} parent=1 // pred_region
      %s28 = ssub.s32 2048, 2048
      %29 = vsyncadd [#allocation7], %s28
      %s30 = sshll.u32 [#allocation6], 4
      %s31 = int_to_ptr.vmem [resolvable:$true] %s30
      %36 = dma.hbm_to_vmem [thread:$0]  %s1, 2048, %s31, [#allocation7], 128, 128, 8
    $region9: #{tpu_custom_call.1} parent=1 // pred_fallthru
      _
    // Predicated region
    $region10: #{tpu_custom_call.1} parent=1 // pred_check
      _
    $region11: #{tpu_custom_call.1} parent=1 // pred_check_branch
      %38 = sbr.rel (0) target = $region13
    $region12: #{tpu_custom_call.1} parent=1 // pred_region
      %s39 = sadd.s32 0, 0
      %s41 = ssub.s32 256, 256
      %42 = vsyncadd [#allocation7], %s41
      %s43 = smul.addr %s39, 2
      %s44 = smul.addr %s43, 128
      %s45 = scalar_lea.hbm %s2, %s44
      %s46 = sshll.u32 [#allocation8], 4
      %s47 = int_to_ptr.vmem [resolvable:$true] %s46
      %52 = dma.hbm_to_vmem [thread:$0]  %s45, 256, %s47, [#allocation7], 128, 128, 8
    $region13: #{tpu_custom_call.1} parent=1 // pred_fallthru
      _
    // Predicated region
    $region14: #{tpu_custom_call.1} parent=1 // pred_check
      _
    $region15: #{tpu_custom_call.1} parent=1 // pred_check_branch
      %54 = sbr.rel (0) target = $region17
    $region16: #{tpu_custom_call.1} parent=1 // pred_region
      %s55 = sadd.s32 0, 0
      %s57 = ssub.s32 256, 256
      %58 = vsyncadd [#allocation10], %s57
      %s59 = smul.addr %s55, 2
      %s60 = smul.addr %s59, 128
      %s61 = scalar_lea.hbm %s3, %s60
      %s62 = sshll.u32 [#allocation9], 4
      %s63 = int_to_ptr.vmem [resolvable:$true] %s62
      %68 = dma.hbm_to_vmem [thread:$0]  %s61, 256, %s63, [#allocation10], 128, 128, 8
    $region17: #{tpu_custom_call.1} parent=1 // pred_fallthru
      _
    // Predicated region
    $region18: #{tpu_custom_call.1} parent=1 // pred_check
      _
    $region19: #{tpu_custom_call.1} parent=1 // pred_check_branch
      %70 = sbr.rel (0) target = $region21
    $region20: #{tpu_custom_call.1} parent=1 // pred_region
      %71 = dma.done [#allocation4], 256
    $region21: #{tpu_custom_call.1} parent=1 // pred_fallthru
      _
    // Predicated region
    $region22: #{tpu_custom_call.1} parent=1 // pred_check
      _
    $region23: #{tpu_custom_call.1} parent=1 // pred_check_branch
      %73 = sbr.rel (0) target = $region25
    $region24: #{tpu_custom_call.1} parent=1 // pred_region
      %74 = dma.done [#allocation7], 2048
    $region25: #{tpu_custom_call.1} parent=1 // pred_fallthru
      _
    // Predicated region
    $region26: #{tpu_custom_call.1} parent=1 // pred_check
      _
    $region27: #{tpu_custom_call.1} parent=1 // pred_check_branch
      %76 = sbr.rel (0) target = $region29
    $region28: #{tpu_custom_call.1} parent=1 // pred_region
      %77 = dma.done [#allocation7], 256
    $region29: #{tpu_custom_call.1} parent=1 // pred_fallthru
      _
    // Predicated region
    $region30: #{tpu_custom_call.1} parent=1 // pred_check
      _
    $region31: #{tpu_custom_call.1} parent=1 // pred_check_branch
      %79 = sbr.rel (0) target = $region33
    $region32: #{tpu_custom_call.1} parent=1 // pred_region
      %80 = dma.done [#allocation10], 256
    $region33: #{tpu_custom_call.1} parent=1 // pred_fallthru
      _
    %s81 = sadd.s32 0, 0
    %s82 = sadd.s32 0, 0
    %p83 = scmp.eq.s32.totalorder 0, 0
    // Predicated region
    $region34: #{tpu_custom_call.1} parent=1 // pred_check
      %p84 = pneg %p83
    $region35: #{tpu_custom_call.1} parent=1 // pred_check_branch
      %86 = sbr.rel (%p84) target = $region37
    $region36: #{tpu_custom_call.1} parent=1 // pred_region
      %87 = vst [vmem:[#allocation2] sm:$0xff] 0.0
      %88 = vst [vmem:[#allocation2 + $0x8] sm:$0xff] 0.0
    $region37: #{tpu_custom_call.1} parent=1 // pred_fallthru
      _
    %v89 = vld [vmem:[#allocation8] sm:$0xff]
    %v90 = vld [vmem:[#allocation8 + $0x8] sm:$0xff]
    %v91 = vld [vmem:[#allocation9] sm:$0xff]
    %v92 = vld [vmem:[#allocation9 + $0x8] sm:$0xff]
    %v93 = vsub.f32 %v89, %v91
    %v94 = vsub.f32 %v90, %v92
    %v95 = vld [vmem:[#allocation6] sm:$0xff]
    %v96 = vld [vmem:[#allocation6 + $0x8] sm:$0xff]
    %v97 = vld [vmem:[#allocation6 + $0x10] sm:$0xff]
    %v98 = vld [vmem:[#allocation6 + $0x18] sm:$0xff]
    %v99 = vld [vmem:[#allocation6 + $0x20] sm:$0xff]
    %v100 = vld [vmem:[#allocation6 + $0x28] sm:$0xff]
    %v101 = vld [vmem:[#allocation6 + $0x30] sm:$0xff]
    %v102 = vld [vmem:[#allocation6 + $0x38] sm:$0xff]
    %v103 = vld [vmem:[#allocation6 + $0x40] sm:$0xff]
    %v104 = vld [vmem:[#allocation6 + $0x48] sm:$0xff]
    %v105 = vld [vmem:[#allocation6 + $0x50] sm:$0xff]
    %v106 = vld [vmem:[#allocation6 + $0x58] sm:$0xff]
    %v107 = vld [vmem:[#allocation6 + $0x60] sm:$0xff]
    %v108 = vld [vmem:[#allocation6 + $0x68] sm:$0xff]
    %v109 = vld [vmem:[#allocation6 + $0x70] sm:$0xff]
    %v110 = vld [vmem:[#allocation6 + $0x78] sm:$0xff]
    %111 = vmatprep.subr.mxu0 0.0
    %112 = vmatpush1.msra.mxu0 %v95
    %113 = vmatprep.subr.mxu0 0.0
    %114 = vmatpush1.msra.mxu0 %v96
    %115 = vmatprep.subr.mxu0 0.0
    %116 = vmatpush1.msra.mxu0 %v97
    %117 = vmatprep.subr.mxu0 0.0
    %118 = vmatpush1.msra.mxu0 %v98
    %119 = vmatprep.subr.mxu0 0.0
    %120 = vmatpush1.msra.mxu0 %v99
    %121 = vmatprep.subr.mxu0 0.0
    %122 = vmatpush1.msra.mxu0 %v100
    %123 = vmatprep.subr.mxu0 0.0
    %124 = vmatpush1.msra.mxu0 %v101
    %125 = vmatprep.subr.mxu0 0.0
    %126 = vmatpush1.msra.mxu0 %v102
    %127 = vmatprep.subr.mxu0 0.0
    %128 = vmatpush1.msra.mxu0 %v103
    %129 = vmatprep.subr.mxu0 0.0
    %130 = vmatpush1.msra.mxu0 %v104
    %131 = vmatprep.subr.mxu0 0.0
    %132 = vmatpush1.msra.mxu0 %v105
    %133 = vmatprep.subr.mxu0 0.0
    %134 = vmatpush1.msra.mxu0 %v106
    %135 = vmatprep.subr.mxu0 0.0
    %136 = vmatpush1.msra.mxu0 %v107
    %137 = vmatprep.subr.mxu0 0.0
    %138 = vmatpush1.msra.mxu0 %v108
    %139 = vmatprep.subr.mxu0 0.0
    %140 = vmatpush1.msra.mxu0 %v109
    %141 = vmatprep.subr.mxu0 0.0
    %142 = vmatpush1.msra.mxu0 %v110
    %143 = vmatprep.subr.mxu0 0.0
    %144 = vmatpush1.msra.mxu0 0.0
    %145 = vmatprep.subr.mxu0 0.0
    %146 = vmatpush1.msra.mxu0 0.0
    %147 = vmatprep.subr.mxu0 0.0
    %148 = vmatpush1.msra.mxu0 0.0
    %149 = vmatprep.subr.mxu0 0.0
    %150 = vmatpush1.msra.mxu0 0.0
    %151 = vmatprep.subr.mxu0 0.0
    %152 = vmatpush1.msra.mxu0 0.0
    %153 = vmatprep.subr.mxu0 0.0
    %154 = vmatpush1.msra.mxu0 0.0
    %155 = vmatprep.subr.mxu0 0.0
    %156 = vmatpush1.msra.mxu0 0.0
    %157 = vmatprep.subr.mxu0 0.0
    %158 = vmatpush1.msra.mxu0 0.0
    %159 = vmatprep.subr.mxu0 0.0
    %160 = vmatpush1.msra.mxu0 0.0
    %161 = vmatprep.subr.mxu0 0.0
    %162 = vmatpush1.msra.mxu0 0.0
    %163 = vmatprep.subr.mxu0 0.0
    %164 = vmatpush1.msra.mxu0 0.0
    %165 = vmatprep.subr.mxu0 0.0
    %166 = vmatpush1.msra.mxu0 0.0
    %167 = vmatprep.subr.mxu0 0.0
    %168 = vmatpush1.msra.mxu0 0.0
    %169 = vmatprep.subr.mxu0 0.0
    %170 = vmatpush1.msra.mxu0 0.0
    %171 = vmatprep.subr.mxu0 0.0
    %172 = vmatpush1.msra.mxu0 0.0
    %173 = vmatprep.subr.mxu0 0.0
    %174 = vmatpush1.msra.mxu0 0.0
    %175 = vmatprep.mubr.f32.mxu0 0.0
    %176 = vmatmul.mubr.f32.gmra.mrb[0].mxu0 %v93
    %v177 = vpop.f32.mrb[0].mxu0
    %v178 = vadd.f32 0.0, %v177
    %v179 = vpop.f32.mrb[0].mxu0
    %180 = vmatprep.mubr.f32.mxu0 0.0
    %181 = vmatmul.mubr.f32.gmra.mrb[0].mxu0 %v94
    %v182 = vpop.f32.mrb[0].mxu0
    %v183 = vadd.f32 0.0, %v182
    %v184 = vpop.f32.mrb[0].mxu0
    %185 = vdwg.mxu0
    %v186 = vld [vmem:[#allocation3] sm:$0xff]
    %v187 = vld [vmem:[#allocation3 + $0x8] sm:$0xff]
    %vm188 = vcmask 130048
    %v190 = vsel %vm188, %v186, 0
    %v193 = vsel %vm188, %v187, 0
    %195 = vmatprep.subr.mxu0 0.0
    %196 = vmatpush1.msra.mxu0 %v178
    %197 = vmatprep.subr.mxu0 0.0
    %198 = vmatpush1.msra.mxu0 %v183
    %199 = vmatprep.subr.mxu0 0.0
    %200 = vmatpush1.msra.mxu0 0.0
    %201 = vmatprep.subr.mxu0 0.0
    %202 = vmatpush1.msra.mxu0 0.0
    %203 = vmatprep.subr.mxu0 0.0
    %204 = vmatpush1.msra.mxu0 0.0
    %205 = vmatprep.subr.mxu0 0.0
    %206 = vmatpush1.msra.mxu0 0.0
    %207 = vmatprep.subr.mxu0 0.0
    %208 = vmatpush1.msra.mxu0 0.0
    %209 = vmatprep.subr.mxu0 0.0
    %210 = vmatpush1.msra.mxu0 0.0
    %211 = vmatprep.subr.mxu0 0.0
    %212 = vmatpush1.msra.mxu0 0.0
    %213 = vmatprep.subr.mxu0 0.0
    %214 = vmatpush1.msra.mxu0 0.0
    %215 = vmatprep.subr.mxu0 0.0
    %216 = vmatpush1.msra.mxu0 0.0
    %217 = vmatprep.subr.mxu0 0.0
    %218 = vmatpush1.msra.mxu0 0.0
    %219 = vmatprep.subr.mxu0 0.0
    %220 = vmatpush1.msra.mxu0 0.0
    %221 = vmatprep.subr.mxu0 0.0
    %222 = vmatpush1.msra.mxu0 0.0
    %223 = vmatprep.subr.mxu0 0.0
    %224 = vmatpush1.msra.mxu0 0.0
    %225 = vmatprep.subr.mxu0 0.0
    %226 = vmatpush1.msra.mxu0 0.0
    %227 = vmatprep.subr.mxu0 0.0
    %228 = vmatpush1.msra.mxu0 0.0
    %229 = vmatprep.subr.mxu0 0.0
    %230 = vmatpush1.msra.mxu0 0.0
    %231 = vmatprep.subr.mxu0 0.0
    %232 = vmatpush1.msra.mxu0 0.0
    %233 = vmatprep.subr.mxu0 0.0
    %234 = vmatpush1.msra.mxu0 0.0
    %235 = vmatprep.subr.mxu0 0.0
    %236 = vmatpush1.msra.mxu0 0.0
    %237 = vmatprep.subr.mxu0 0.0
    %238 = vmatpush1.msra.mxu0 0.0
    %239 = vmatprep.subr.mxu0 0.0
    %240 = vmatpush1.msra.mxu0 0.0
    %241 = vmatprep.subr.mxu0 0.0
    %242 = vmatpush1.msra.mxu0 0.0
    %243 = vmatprep.subr.mxu0 0.0
    %244 = vmatpush1.msra.mxu0 0.0
    %245 = vmatprep.subr.mxu0 0.0
    %246 = vmatpush1.msra.mxu0 0.0
    %247 = vmatprep.subr.mxu0 0.0
    %248 = vmatpush1.msra.mxu0 0.0
    %249 = vmatprep.subr.mxu0 0.0
    %250 = vmatpush1.msra.mxu0 0.0
    %251 = vmatprep.subr.mxu0 0.0
    %252 = vmatpush1.msra.mxu0 0.0
    %253 = vmatprep.subr.mxu0 0.0
    %254 = vmatpush1.msra.mxu0 0.0
    %255 = vmatprep.subr.mxu0 0.0
    %256 = vmatpush1.msra.mxu0 0.0
    %257 = vmatprep.subr.mxu0 0.0
    %258 = vmatpush1.msra.mxu0 0.0
    %259 = vmatprep.mubr.f32.mxu0 0.0
    %260 = vmatmul.mubr.f32.gmra.mrb[0].mxu0 %v190
    %v261 = vpop.f32.mrb[0].mxu0
    %v262 = vadd.f32 0.0, %v261
    %v263 = vpop.f32.mrb[0].mxu0
    %264 = vmatprep.mubr.f32.mxu0 0.0
    %265 = vmatmul.mubr.f32.gmra.mrb[0].mxu0 %v193
    %v266 = vpop.f32.mrb[0].mxu0
    %v267 = vadd.f32 0.0, %v266
    %v268 = vpop.f32.mrb[0].mxu0
    %269 = vdwg.mxu0
    %v270 = vld [vmem:[#allocation2] sm:$0xff]
    %v271 = vld [vmem:[#allocation2 + $0x8] sm:$0xff]
    %v272 = vsub.f32 %v93, %v262
    %v273 = vsub.f32 %v94, %v267
    %v274 = vand.u32 2147483647, %v272
    %v275 = vand.u32 2147483647, %v273
    %v276 = vadd.f32 %v270, %v274
    %v277 = vadd.f32 %v271, %v275
    %278 = vst [vmem:[#allocation2] sm:$0xff] %v276
    %279 = vst [vmem:[#allocation2 + $0x8] sm:$0xff] %v277
    // Predicated region
    $region38: #{tpu_custom_call.1} parent=1 // pred_check
      %p280 = pneg %p83
    $region39: #{tpu_custom_call.1} parent=1 // pred_check_branch
      %282 = sbr.rel (%p280) target = $region41
    $region40: #{tpu_custom_call.1} parent=1 // pred_region
      %v283 = vld [vmem:[#allocation2] sm:$0xff]
      %v284 = vld [vmem:[#allocation2 + $0x8] sm:$0xff]
      %v285 = vadd.f32 %v283, %v284
      %286 = vadd.xlane.f32.xlu0 %v285
      %v287 = vpop.xlane.xlu0 %286
      %v288 = vrot.slane %v287, 4
      %v289 = vadd.f32 %v287, %v288
      %v290 = vrot.slane %v289, 2
      %v291 = vadd.f32 %v289, %v290
      %v292 = vrot.slane %v291, 1
      %v293 = vadd.f32 %v291, %v292
      %s294 = vtos %v293
      %v295 = vstv %s294
      %v296 = vadd.f32 %v295, 0.0
      %vm297 = vcmask 0
      %298 = vst.msk [vmem:[#allocation11] sm:$0x1] %vm297, %v296
    $region41: #{tpu_custom_call.1} parent=1 // pred_fallthru
      _
    // Predicated region
    $region42: #{tpu_custom_call.1} parent=1 // pred_check
      _
    $region43: #{tpu_custom_call.1} parent=1 // pred_check_branch
      %300 = sbr.rel (0) target = $region45
    $region44: #{tpu_custom_call.1} parent=1 // pred_region
      %s302 = ssub.s32 16, 16
      %303 = vsyncadd [#allocation5], %s302
      %s305 = sshll.u32 [#allocation11], 4
      %s306 = int_to_ptr.vmem [resolvable:$true] %s305
      %308 = dma.vmem_to_hbm [thread:$0]  %s306, 16, %s4, [#allocation5]
    $region45: #{tpu_custom_call.1} parent=1 // pred_fallthru
      _
    // Predicated region
    $region46: #{tpu_custom_call.1} parent=1 // pred_check
      _
    $region47: #{tpu_custom_call.1} parent=1 // pred_check_branch
      %310 = sbr.rel (0) target = $region49
    $region48: #{tpu_custom_call.1} parent=1 // pred_region
      %311 = dma.done [#allocation5], 16
    $region49: #{tpu_custom_call.1} parent=1 // pred_fallthru
      _
    %312 = vsyncpa [#allocation4], 1
    %313 = vsyncpa [#allocation7], 1
    %314 = vsyncpa [#allocation10], 1
    %315 = vsyncpa [#allocation5], 1

</llo_original>
